<compile_context>
chip_gen: v7x
topology: tpu7x:2x2x1
jax: 0.10.0
libtpu: 0.0.40
codegen_flags: <defaults>
</compile_context>

<pallas_src>
import functools

import numpy as np
import jax
import jax.numpy as jnp
from jax.experimental import pallas as pl
from jax.experimental.pallas import tpu as pltpu


def _round_up(x, m):
    return ((x + m - 1) // m) * m


def _cdiv(a, b):
    return (a + b - 1) // b


# ----------------------------------------------------------------------------
# Deterministic parameter construction (numpy, mirrors the module __init__).
# ----------------------------------------------------------------------------
def _hz_to_mel_htk(f):
    return 2595.0 * np.log10(1.0 + np.asarray(f, dtype=np.float64) / 700.0)


def _mel_to_hz_htk(m):
    return 700.0 * (10.0 ** (np.asarray(m, dtype=np.float64) / 2595.0) - 1.0)


def mel_filterbank(sr, n_fft, n_mels, fmin=0.0, fmax=None):
    """librosa.filters.mel(htk=True, norm='slaney') equivalent.

    The RMVPE MelSpectrogram module explicitly passes htk=True, so the HTK
    mel scale used here matches the original buffers.
    """
    if fmax is None:
        fmax = sr / 2.0
    n_freqs = n_fft // 2 + 1
    fftfreqs = np.linspace(0.0, sr / 2.0, n_freqs)
    mel_pts = np.linspace(_hz_to_mel_htk(fmin), _hz_to_mel_htk(fmax), n_mels + 2)
    hz = _mel_to_hz_htk(mel_pts)
    fdiff = np.diff(hz)
    ramps = hz[:, None] - fftfreqs[None, :]
    weights = np.zeros((n_mels, n_freqs), dtype=np.float64)
    for i in range(n_mels):
        lower = -ramps[i] / fdiff[i]
        upper = ramps[i + 2] / fdiff[i + 1]
        weights[i] = np.maximum(0.0, np.minimum(lower, upper))
    enorm = 2.0 / (hz[2 : n_mels + 2] - hz[:n_mels])  # slaney normalization
    weights *= enorm[:, None]
    return weights.astype(np.float32)  # [n_mels, cutoff]


def stft_forward_basis(n_fft, win_length):
    """Windowed real/imag Fourier basis, as in STFT.__init__ (forward only)."""
    fourier = np.fft.fft(np.eye(n_fft))
    cutoff = n_fft // 2 + 1
    real = np.real(fourier[:cutoff, :])
    imag = np.imag(fourier[:cutoff, :])
    # periodic ('fftbins') Hann window, pad_center to n_fft
    n = np.arange(win_length)
    win = 0.5 - 0.5 * np.cos(2.0 * np.pi * n / win_length)
    lpad = (n_fft - win_length) // 2
    win_p = np.zeros(n_fft)
    win_p[lpad : lpad + win_length] = win
    wr = (real * win_p[None, :]).astype(np.float32)  # [cutoff, n_fft]
    wi = (imag * win_p[None, :]).astype(np.float32)  # [cutoff, n_fft]
    return wr, wi


def build_packed_params(sample_rate, n_fft, win_length, n_mels, fmin=0.0, fmax=None):
    """Pack the STFT basis and mel filterbank into lane-dense bf16 operands."""
    assert n_fft % 256 == 0, "n_fft must be a multiple of 256 for lane alignment"
    wr, wi = stft_forward_basis(n_fft, win_length)           # [cutoff, n_fft] each
    half = n_fft // 2
    # frames @ w_packed -> [re_0 .. re_half, im_1 .. im_{half-1}]   (width n_fft)
    w_packed = np.concatenate([wr.T, wi[1:half].T], axis=1)
    mel_b = mel_filterbank(sample_rate, n_fft, n_mels, fmin, fmax)  # [n_mels, cutoff]
    n_mels_pad = _round_up(n_mels, 128)
    k_pad = half + 128                                        # = round_up(half+1, 128)
    mel_packed = np.zeros((k_pad, n_mels_pad), np.float32)
    mel_packed[: half + 1, :n_mels] = mel_b.T                 # rows 0..half = bins 0..half
    # bf16 operands for the MXU (f32 accumulation in-kernel).
    return (jnp.asarray(w_packed, dtype=jnp.bfloat16),
            jnp.asarray(mel_packed, dtype=jnp.bfloat16),
            wr, wi, mel_b)


# ----------------------------------------------------------------------------
# Shared per-tile math: (TILE_F, n_fft) frames -> log-mel tile.
# ----------------------------------------------------------------------------
def _logmel_tile(frames_f32, w_ref, mel_ref, out_ref, *, half, clamp):
    # bf16 operands, f32 accumulation on the MXU.
    f_bf = frames_f32.astype(jnp.bfloat16)
    s = jnp.dot(f_bf, w_ref[...], preferred_element_type=jnp.float32)  # (TILE_F, n_fft)
    r = s[:, :half]     # real bins 0..half-1                (lane-aligned slice)
    x = s[:, half:]     # [real bin half, imag bins 1..half-1]
    lane = jax.lax.broadcasted_iota(jnp.int32, x.shape, 1)
    i_mid = jnp.where(lane == 0, 0.0, x)                  # imag for bins 0..half-1
    mag_low = jnp.sqrt(r * r + i_mid * i_mid)             # EUP sqrt over half lanes only
    xh = x[:, :128]
    lane_h = jax.lax.broadcasted_iota(jnp.int32, xh.shape, 1)
    mag_high = jnp.where(lane_h == 0, jnp.abs(xh), 0.0)   # |X_nyquist| via abs (VPU)
    # (TILE_F, half + 128) magnitude slab; mel rows > half are zero.
    mag = jnp.concatenate([mag_low, mag_high], axis=1).astype(jnp.bfloat16)
    mel = jnp.dot(mag, mel_ref[...], preferred_element_type=jnp.float32)
    out_ref[...] = jnp.log(jnp.maximum(mel, clamp))


def _mel_kernel_framed(main_ref, next_ref, w_ref, mel_ref, out_ref, *,
                       ratio, tile_f, half, clamp):
    # main_ref : (TILE_F, hop)      hop-blocks owned by this tile
    # next_ref : (next_rows, hop)   first blocks of the next tile (frame overlap)
    # w_ref    : (n_fft, n_fft)     bf16 packed windowed rfft basis (resident)
    # mel_ref  : (half+128, Mpad)   bf16 packed mel basis (resident)
    # out_ref  : (TILE_F, Mpad)
    chunk = jnp.concatenate([main_ref[...], next_ref[...]], axis=0)
    # frames[f, j*hop:(j+1)*hop] = chunk[f + j]  -> ratio shifted sublane slices.
    frames = jnp.concatenate(
        [jax.lax.slice_in_dim(chunk, j, j + tile_f, axis=0) for j in range(ratio)],
        axis=1)                                            # (TILE_F, n_fft) f32
    _logmel_tile(frames, w_ref, mel_ref, out_ref, half=half, clamp=clamp)


def _mel_kernel_prefr(frames_ref, w_ref, mel_ref, out_ref, *, half, clamp):
    # frames_ref : (TILE_F, n_fft)  pre-framed by an XLA gather (fallback path)
    _logmel_tile(frames_ref[...], w_ref, mel_ref, out_ref, half=half, clamp=clamp)


def _choose_tile_f(n_frames, batch, tile_f, step_rows):
    t = min(tile_f, _round_up(n_frames, 8))
    if batch == 1:
        # keep >= 2 grid steps so the "parallel" grid can still shard across
        # both v7x TensorCores for a single-clip batch
        t = min(t, max(8, _round_up(_cdiv(n_frames, 2), 8)))
    return _round_up(max(t, 8), step_rows)


# ----------------------------------------------------------------------------
# Wrapper.
# ----------------------------------------------------------------------------
def mel_spectrogram(audio, w_packed, mel_packed, *, n_fft, hop_length, n_mels,
                    clamp=1e-5, tile_f=512, framing="auto"):
    """audio [B, T] float32 -> log-mel [B, n_mels, n_frames] float32."""
    audio = audio.astype(jnp.float32)
    B, _ = audio.shape
    pad = n_fft // 2
    padded = jnp.pad(audio, ((0, 0), (pad, pad)), mode="reflect")
    total = padded.shape[1]
    n_frames = (total - n_fft) // hop_length + 1
    half = n_fft // 2
    k_pad, n_mels_pad = mel_packed.shape

    use_framed = (framing != "xla"
                  and hop_length % 128 == 0
                  and n_fft % hop_length == 0)

    if use_framed:
        # --- in-kernel framing: audio enters as hop-sized blocks ------------
        ratio = n_fft // hop_length
        next_rows = _round_up(max(ratio - 1, 1), 8)
        TILE_F = _choose_tile_f(n_frames, B, tile_f, next_rows)
        num_tiles = _cdiv(n_frames, TILE_F)
        n_frames_pad = num_tiles * TILE_F
        n_blocks = max(n_frames_pad + next_rows, _cdiv(total, hop_length))
        blocks_len = n_blocks * hop_length
        padded = jnp.pad(padded, ((0, 0), (0, blocks_len - total)))  # zero tail
        blocks = padded.reshape(B, n_blocks, hop_length)
        tiles_per_next = TILE_F // next_rows
        kernel = functools.partial(_mel_kernel_framed, ratio=ratio, tile_f=TILE_F,
                                   half=half, clamp=float(clamp))
        in_specs = [
            pl.BlockSpec((None, TILE_F, hop_length), lambda b, i: (b, i, 0)),
            pl.BlockSpec((None, next_rows, hop_length),
                         lambda b, i: (b, (i + 1) * tiles_per_next, 0)),
            pl.BlockSpec((n_fft, n_fft), lambda b, i: (0, 0)),
            pl.BlockSpec((k_pad, n_mels_pad), lambda b, i: (0, 0)),
        ]
        args = (blocks, blocks, w_packed, mel_packed)
    else:
        # TODO(synk): in-kernel framing for hops that do not divide n_fft
        # (e.g. RMVPE's hop=160, n_fft=1024) needs unaligned lane assembly;
        # fall back to an XLA gather.  Frame indices are clamped so no extra
        # jnp.pad copy of the (amplified) frames array is made.
        TILE_F = _choose_tile_f(n_frames, B, tile_f, 8)
        num_tiles = _cdiv(n_frames, TILE_F)
        n_frames_pad = num_tiles * TILE_F
        f_idx = jnp.minimum(jnp.arange(n_frames_pad), n_frames - 1)
        sample_idx = f_idx[:, None] * hop_length + jnp.arange(n_fft)[None, :]
        frames = padded[:, sample_idx]                     # (B, n_frames_pad, n_fft)
        kernel = functools.partial(_mel_kernel_prefr, half=half, clamp=float(clamp))
        in_specs = [
            pl.BlockSpec((None, TILE_F, n_fft), lambda b, i: (b, i, 0)),
            pl.BlockSpec((n_fft, n_fft), lambda b, i: (0, 0)),
            pl.BlockSpec((k_pad, n_mels_pad), lambda b, i: (0, 0)),
        ]
        args = (frames, w_packed, mel_packed)

    out = pl.pallas_call(
        kernel,
        out_shape=jax.ShapeDtypeStruct((B, n_frames_pad, n_mels_pad), jnp.float32),
        grid=(B, num_tiles),
        in_specs=in_specs,
        out_specs=pl.BlockSpec((None, TILE_F, n_mels_pad), lambda b, i: (b, i, 0)),
        compiler_params=pltpu.CompilerParams(
            dimension_semantics=("parallel", "parallel"),
            # sized against v7x's 64 MiB VMEM (leave headroom); v5e/v6e have more
            vmem_limit_bytes=48 * 1024 * 1024,
        ),
    )(*args)

    mel = out[:, :n_frames, :n_mels]
    # back to the PyTorch convention [B, n_mels, n_frames]
    return jnp.transpose(mel, (0, 2, 1))


# ----------------------------------------------------------------------------
# Pure-JAX f32 reference (mirrors the PyTorch module directly).
# ----------------------------------------------------------------------------
def reference_logmel(audio, wr, wi, mel_b, *, n_fft, hop_length, clamp):
    audio = audio.astype(jnp.float32)
    pad = n_fft // 2
    padded = jnp.pad(audio, ((0, 0), (pad, pad)), mode="reflect")
    n_frames = (padded.shape[1] - n_fft) // hop_length + 1
    idx = jnp.arange(n_frames)[:, None] * hop_length + jnp.arange(n_fft)[None, :]
    frames = padded[:, idx]                                   # [B, F, n_fft]
    real = jnp.einsum("bfn,cn->bfc", frames, jnp.asarray(wr))
    imag = jnp.einsum("bfn,cn->bfc", frames, jnp.asarray(wi))
    mag = jnp.sqrt(real * real + imag * imag)                 # [B, F, cutoff]
    mel = jnp.einsum("mc,bfc->bmf", jnp.asarray(mel_b), mag)  # [B, n_mels, F]
    return jnp.log(jnp.maximum(mel, clamp))


if __name__ == "__main__":
    # Small, module-consistent configuration.
    sample_rate = 16000
    n_fft = 256          # win_length == n_fft (module default when n_fft=None)
    win_length = 256
    n_mel_channels = 32
    clamp = 1e-5

    B, T = 2, 1024
    key = jax.random.PRNGKey(0)
    audio = jax.random.normal(key, (B, T), dtype=jnp.float32)

    w_packed, mel_packed, wr, wi, mel_b = build_packed_params(
        sample_rate, n_fft, win_length, n_mel_channels)

    # --- case 1: hop | n_fft and hop % 128 == 0 -> in-kernel framing path ---
    hop = 128
    out = mel_spectrogram(
        audio, w_packed, mel_packed,
        n_fft=n_fft, hop_length=hop, n_mels=n_mel_channels, clamp=clamp)
    out = jax.block_until_ready(out)

    expected_frames = (T + 2 * (n_fft // 2) - n_fft) // hop + 1
    assert out.shape == (B, n_mel_channels, expected_frames), out.shape
    assert out.dtype == jnp.float32
    assert bool(jnp.all(jnp.isfinite(out)))

    ref = reference_logmel(audio, wr, wi, mel_b,
                           n_fft=n_fft, hop_length=hop, clamp=clamp)
    err = jnp.abs(out - ref)
    max_err, mean_err = float(jnp.max(err)), float(jnp.mean(err))
    assert max_err < 5e-2, f"max |pallas - ref| = {max_err}"
    assert mean_err < 2e-2, f"mean |pallas - ref| = {mean_err}"

    # --- case 2: general hop (XLA framing fallback, like RMVPE hop=160) -----
    hop2 = 96
    out2 = mel_spectrogram(
        audio, w_packed, mel_packed,
        n_fft=n_fft, hop_length=hop2, n_mels=n_mel_channels, clamp=clamp)
    out2 = jax.block_until_ready(out2)
    ref2 = reference_logmel(audio, wr, wi, mel_b,
                            n_fft=n_fft, hop_length=hop2, clamp=clamp)
    assert out2.shape == ref2.shape, (out2.shape, ref2.shape)
    max_err2 = float(jnp.max(jnp.abs(out2 - ref2)))
    assert max_err2 < 5e-2, f"max |pallas - ref| (fallback) = {max_err2}"

    print("KERNEL_OK")
</pallas_src>

<mosaic_0001>
module attributes {stable_mosaic.version = 11 : i64} {
  func.func @_mel_kernel_framed(%arg0: i32, %arg1: i32, %arg2: memref<1x16x128xf32, #tpu.memory_space<vmem>>, %arg3: memref<1x8x128xf32, #tpu.memory_space<vmem>>, %arg4: memref<256x256xbf16, #tpu.memory_space<vmem>>, %arg5: memref<256x128xbf16, #tpu.memory_space<vmem>>, %arg6: memref<1x16x128xf32, #tpu.memory_space<vmem>>) attributes {dimension_semantics = [#tpu.dimension_semantics<parallel>, #tpu.dimension_semantics<parallel>], iteration_bounds = array<i64: 2, 1>, scalar_prefetch = 0 : i64, scratch_operands = 0 : i64, tpu.core_type = #tpu.core_type<tc>, window_params = [{transform_indices = @transform_0, window_bounds = array<i64: 1, 16, 128>}, {transform_indices = @transform_1, window_bounds = array<i64: 1, 8, 128>}, {pipeline_mode = #tpu.pipeline_mode<synchronous>, transform_indices = @transform_2, window_bounds = array<i64: 256, 256>}, {pipeline_mode = #tpu.pipeline_mode<synchronous>, transform_indices = @transform_3, window_bounds = array<i64: 256, 128>}, {transform_indices = @transform_4, window_bounds = array<i64: 1, 16, 128>}]} {
    %c0 = arith.constant 0 : index
    %c0_0 = arith.constant 0 : index
    %c0_1 = arith.constant 0 : index
    %0 = vector.load %arg2[%c0, %c0_0, %c0_1] : memref<1x16x128xf32, #tpu.memory_space<vmem>>, vector<1x16x128xf32>
    %1 = vector.shape_cast %0 : vector<1x16x128xf32> to vector<16x128xf32>
    %c0_2 = arith.constant 0 : index
    %c0_3 = arith.constant 0 : index
    %c0_4 = arith.constant 0 : index
    %2 = vector.load %arg3[%c0_2, %c0_3, %c0_4] : memref<1x8x128xf32, #tpu.memory_space<vmem>>, vector<1x8x128xf32>
    %3 = vector.shape_cast %2 : vector<1x8x128xf32> to vector<8x128xf32>
    %4 = tpu.concatenate %1, %3 in 0 : vector<16x128xf32>, vector<8x128xf32> -> vector<24x128xf32>
    %5 = vector.extract_strided_slice %4 {offsets = [0, 0], sizes = [16, 128], strides = [1, 1]} : vector<24x128xf32> to vector<16x128xf32>
    %6 = vector.extract_strided_slice %4 {offsets = [1, 0], sizes = [16, 128], strides = [1, 1]} : vector<24x128xf32> to vector<16x128xf32>
    %7 = tpu.concatenate %5, %6 in 1 : vector<16x128xf32>, vector<16x128xf32> -> vector<16x256xf32>
    %8 = arith.truncf %7 : vector<16x256xf32> to vector<16x256xbf16>
    %c0_5 = arith.constant 0 : index
    %c0_6 = arith.constant 0 : index
    %9 = vector.load %arg4[%c0_5, %c0_6] : memref<256x256xbf16, #tpu.memory_space<vmem>>, vector<256x256xbf16>
    %cst = arith.constant dense<0.000000e+00> : vector<16x256xf32>
    %10 = tpu.matmul %8, %9, %cst {dimension_numbers = #tpu.dot_dimension_numbers<[1], [0], [0], [1], [0, 0, 1, 1], [], []>} : vector<16x256xbf16>, vector<256x256xbf16>, vector<16x256xf32> -> vector<16x256xf32>
    %11 = vector.extract_strided_slice %10 {offsets = [0, 0], sizes = [16, 128], strides = [1, 1]} : vector<16x256xf32> to vector<16x128xf32>
    %12 = vector.extract_strided_slice %10 {offsets = [0, 128], sizes = [16, 128], strides = [1, 1]} : vector<16x256xf32> to vector<16x128xf32>
    %13 = tpu.iota {dimensions = array<i32: 1>} : vector<16x128xi32>
    %c0_i32 = arith.constant 0 : i32
    %14 = vector.broadcast %c0_i32 : i32 to vector<16x128xi32>
    %15 = arith.cmpi eq, %13, %14 : vector<16x128xi32>
    %cst_7 = arith.constant 0.000000e+00 : f32
    %16 = vector.broadcast %cst_7 : f32 to vector<16x128xf32>
    %17 = arith.select %15, %16, %12 : vector<16x128xi1>, vector<16x128xf32>
    %18 = arith.mulf %11, %11 : vector<16x128xf32>
    %19 = arith.mulf %17, %17 : vector<16x128xf32>
    %20 = arith.addf %18, %19 : vector<16x128xf32>
    %21 = math.sqrt %20 : vector<16x128xf32>
    %22 = tpu.iota {dimensions = array<i32: 1>} : vector<16x128xi32>
    %c0_i32_8 = arith.constant 0 : i32
    %23 = vector.broadcast %c0_i32_8 : i32 to vector<16x128xi32>
    %24 = arith.cmpi eq, %22, %23 : vector<16x128xi32>
    %25 = math.absf %12 : vector<16x128xf32>
    %cst_9 = arith.constant 0.000000e+00 : f32
    %26 = vector.broadcast %cst_9 : f32 to vector<16x128xf32>
    %27 = arith.select %24, %25, %26 : vector<16x128xi1>, vector<16x128xf32>
    %28 = tpu.concatenate %21, %27 in 1 : vector<16x128xf32>, vector<16x128xf32> -> vector<16x256xf32>
    %29 = arith.truncf %28 : vector<16x256xf32> to vector<16x256xbf16>
    %c0_10 = arith.constant 0 : index
    %c0_11 = arith.constant 0 : index
    %30 = vector.load %arg5[%c0_10, %c0_11] : memref<256x128xbf16, #tpu.memory_space<vmem>>, vector<256x128xbf16>
    %cst_12 = arith.constant dense<0.000000e+00> : vector<16x128xf32>
    %31 = tpu.matmul %29, %30, %cst_12 {dimension_numbers = #tpu.dot_dimension_numbers<[1], [0], [0], [1], [0, 0, 1, 1], [], []>} : vector<16x256xbf16>, vector<256x128xbf16>, vector<16x128xf32> -> vector<16x128xf32>
    %cst_13 = arith.constant 9.99999974E-6 : f32
    %32 = vector.broadcast %cst_13 : f32 to vector<16x128xf32>
    %33 = arith.maximumf %31, %32 : vector<16x128xf32>
    %34 = math.log %33 : vector<16x128xf32>
    %c0_14 = arith.constant 0 : index
    %c0_15 = arith.constant 0 : index
    %c0_16 = arith.constant 0 : index
    %35 = vector.load %arg6[%c0_14, %c0_15, %c0_16] : memref<1x16x128xf32, #tpu.memory_space<vmem>>, vector<1x16x128xf32>
    %36 = vector.shape_cast %35 : vector<1x16x128xf32> to vector<16x128xf32>
    %37 = vector.shape_cast %34 : vector<16x128xf32> to vector<1x16x128xf32>
    tpu.vector_store %arg6[%c0_14, %c0_15, %c0_16], %37 {strides = array<i32>} : memref<1x16x128xf32, #tpu.memory_space<vmem>>, vector<1x16x128xf32>,
    return
  }
  func.func @transform_0(%arg0: i32, %arg1: i32) -> (i32, i32, i32) {
    %c0_i32 = arith.constant 0 : i32
    %c0_i32_0 = arith.constant 0 : i32
    return %arg0, %arg1, %c0_i32 : i32, i32, i32
  }
  func.func @transform_1(%arg0: i32, %arg1: i32) -> (i32, i32, i32) {
    %c1_i32 = arith.constant 1 : i32
    %0 = arith.addi %arg1, %c1_i32 : i32
    %c2_i32 = arith.constant 2 : i32
    %1 = arith.muli %0, %c2_i32 : i32
    %c0_i32 = arith.constant 0 : i32
    %c0_i32_0 = arith.constant 0 : i32
    return %arg0, %1, %c0_i32 : i32, i32, i32
  }
  func.func @transform_2(%arg0: i32, %arg1: i32) -> (i32, i32) {
    %c0_i32 = arith.constant 0 : i32
    %c0_i32_0 = arith.constant 0 : i32
    %c0_i32_1 = arith.constant 0 : i32
    return %c0_i32, %c0_i32_0 : i32, i32
  }
  func.func @transform_3(%arg0: i32, %arg1: i32) -> (i32, i32) {
    %c0_i32 = arith.constant 0 : i32
    %c0_i32_0 = arith.constant 0 : i32
    %c0_i32_1 = arith.constant 0 : i32
    return %c0_i32, %c0_i32_0 : i32, i32
  }
  func.func @transform_4(%arg0: i32, %arg1: i32) -> (i32, i32, i32) {
    %c0_i32 = arith.constant 0 : i32
    %c0_i32_0 = arith.constant 0 : i32
    return %arg0, %arg1, %c0_i32 : i32, i32, i32
  }
}

</mosaic_0001>

<llo_original>
// kernel: tpu_custom_call.1
$region0: #{tpu_custom_call.1}
  #allocation0 [shape = 'u32[]', space=smem, size = 0x4, offset = 0x4, fixed_abs, tag = 'smem constant byte address 0x4 - core index']
  #allocation1 [shape = 'u32[144,128]{1,0:T(1,128)}', space=vmem, size = 0x12000, scoped, tag = 'internal scratch']
  %s0 = inlined_call_operand.hbm [shape: f32[2,24,128], index: 0, kind: input, shape index: {}]
  %s1 = inlined_call_operand.hbm [shape: f32[2,24,128], index: 1, kind: input, shape index: {}]
  %s2 = inlined_call_operand.hbm [shape: bf16[256,256], index: 2, kind: input, shape index: {}]
  %s3 = inlined_call_operand.hbm [shape: bf16[256,128], index: 3, kind: input, shape index: {}]
  %s4 = inlined_call_operand.hbm [shape: f32[2,16,128], index: 4, kind: output, shape index: {}]
  %s5 = sld [smem:[#allocation0]]
  $region65: #{tpu_custom_call.1} parent=0
    _
  %s7 = ssub.s32 1, %s5
  %s8 = scalar_select 0, %s7, %s5
  $region1: #{tpu_custom_call.1} parent=0
    #allocation2 [shape = 'u8[16384]{0}', space=vmem, size = 0x4000, scoped, tag = 'input window, operand 0']
    #allocation3 [shape = 's32[2]{0}', space=sflag, size = 0x8, scoped, tag = 'scoped memory for tpu_custom_call.1']
    #allocation4 [shape = 's32[2]{0}', space=sflag, size = 0x8, scoped, tag = 'scoped memory for tpu_custom_call.1']
    #allocation5 [shape = 'u8[8192]{0}', space=vmem, size = 0x2000, scoped, tag = 'input window, operand 1']
    #allocation6 [shape = 's32[2]{0}', space=sflag, size = 0x8, scoped, tag = 'scoped memory for tpu_custom_call.1']
    #allocation7 [shape = 'u8[131072]{0}', space=vmem, size = 0x20000, scoped, tag = 'input window, operand 2, single buffered']
    #allocation8 [shape = 'u8[65536]{0}', space=vmem, size = 0x10000, scoped, tag = 'input window, operand 3, single buffered']
    #allocation9 [shape = 's32[1]{0}', space=sflag, size = 0x4, scoped, tag = 'scoped memory for tpu_custom_call.1']
    #allocation10 [shape = 'u8[16384]{0}', space=vmem, size = 0x4000, scoped, tag = 'output window, operand 0']
    %9 = vsyncpa [#allocation3], 0
    %s10 = scalar_lea.sflag [#allocation3], 1
    %11 = vsyncpa %s10, 0
    %12 = vsyncpa [#allocation6], 0
    %s13 = scalar_lea.sflag [#allocation6], 1
    %14 = vsyncpa %s13, 0
    %15 = vsyncpa [#allocation9], 0
    %16 = vsyncpa [#allocation4], 0
    %s17 = scalar_lea.sflag [#allocation4], 1
    %18 = vsyncpa %s17, 0
    loop: start=0, step=1, limit=4
    $region2: #{tpu_custom_call.1} parent=1 // loop_pre_header
      _
    $region3: #{tpu_custom_call.1} parent=1 // loop_header
      %s20 = sphi 0, %s24
      %p21 = scmp.ge.s32.totalorder %s20, 4
      %s27 = sphi 0, %s39
      %s28 = sphi 0, %s35
      %s29 = sphi 0, %s27
      %s30 = sphi 0, %s28
      %s31 = sphi 0, %s29
      %s32 = sphi 0, %s30
      %s44 = sphi 0, %s46
      %s47 = sphi 0, %s44
      %s48 = sphi 0, %s47
      %s64 = sphi 0, %s48
      %s76 = sphi 0, %s78
      %s79 = sphi 0, %s76
      %s80 = sphi 0, %s79
      %s96 = sphi 0, %s80
      %s100 = sphi 0, %s100
      %s102 = sphi 0, %s100
      %s103 = sphi 0, %s102
      %s117 = sphi 0, %s103
      %s121 = sphi 0, %s121
      %s123 = sphi 0, %s121
      %s124 = sphi 0, %s123
      %s138 = sphi 0, %s124
      %s146 = sphi 0, %s148
      %s149 = sphi 0, %s146
      %s150 = sphi 0, %s149
      %s166 = sphi 0, %s150
    $region4: #{tpu_custom_call.1} parent=1 // loop_header_branch
      %23 = sbr.rel (%p21) target = $region8
    $region5: #{tpu_custom_call.1} parent=1 // loop_body
      %s25 = ssub.s32 %s20, 1
      %s26 = ssub.s32 %s20, 2
      %s33 = sadd.s32 1, %s28
      %p34 = scmp.ge.s32.totalorder %s33, 1
      %s35 = scalar_select %p34, 0, %s33
      %s36 = sadd.s32 1, %s27
      %s37 = scalar_select %p34, %s36, %s27
      %p38 = scmp.ge.s32.totalorder %s37, 2
      %s39 = scalar_select %p38, 0, %s37
      %s40 = ssub.s32 %s27, %s39
      %s41 = ssub.s32 %s28, %s35
      %s42 = sor.u32 %s40, %s41
      %p43 = scmp.eq.s32.totalorder %s42, 0
      %s45 = sadd.s32 %s44, 1
      %s46 = scalar_select %p43, %s44, %s45
      %p49 = pneg %p43
      %p50 = scmp.eq.s32.totalorder %s20, 1
      %p51 = por %p49, %p50
      %p52 = scmp.ne.s32.totalorder %s44, %s47
      %p53 = scmp.eq.s32.totalorder %s20, 0
      %p54 = por %p52, %p53
      %p55 = scmp.ne.s32.totalorder %s44, %s47
      %p56 = scmp.eq.s32.totalorder %s25, 1
      %p57 = por %p55, %p56
      %p58 = scmp.ne.s32.totalorder %s47, %s48
      %p59 = scmp.eq.s32.totalorder %s25, 0
      %p60 = por %p58, %p59
      %p61 = scmp.ne.s32.totalorder %s47, %s48
      %p62 = scmp.eq.s32.totalorder %s26, 1
      %p63 = por %p61, %p62
      %p65 = scmp.ne.s32.totalorder %s48, %s64
      %p66 = scmp.eq.s32.totalorder %s26, 0
      %p67 = por %p65, %p66
      %s68 = sadd.s32 %s28, 1
      %s69 = smul.u32 %s68, 2
      %s70 = sadd.s32 %s35, 1
      %s71 = smul.u32 %s70, 2
      %s72 = ssub.s32 %s27, %s39
      %s73 = ssub.s32 %s69, %s71
      %s74 = sor.u32 %s72, %s73
      %p75 = scmp.eq.s32.totalorder %s74, 0
      %s77 = sadd.s32 %s76, 1
      %s78 = scalar_select %p75, %s76, %s77
      %p81 = pneg %p75
      %p82 = scmp.eq.s32.totalorder %s20, 1
      %p83 = por %p81, %p82
      %p84 = scmp.ne.s32.totalorder %s76, %s79
      %p85 = scmp.eq.s32.totalorder %s20, 0
      %p86 = por %p84, %p85
      %p87 = scmp.ne.s32.totalorder %s76, %s79
      %p88 = scmp.eq.s32.totalorder %s25, 1
      %p89 = por %p87, %p88
      %p90 = scmp.ne.s32.totalorder %s79, %s80
      %p91 = scmp.eq.s32.totalorder %s25, 0
      %p92 = por %p90, %p91
      %p93 = scmp.ne.s32.totalorder %s79, %s80
      %p94 = scmp.eq.s32.totalorder %s26, 1
      %p95 = por %p93, %p94
      %p97 = scmp.ne.s32.totalorder %s80, %s96
      %p98 = scmp.eq.s32.totalorder %s26, 0
      %p99 = por %p97, %p98
      %s101 = sadd.s32 %s100, 1
      %p104 = scmp.eq.s32.totalorder %s20, 1
      %p105 = scmp.ne.s32.totalorder %s100, %s102
      %p106 = scmp.eq.s32.totalorder %s20, 0
      %p107 = por %p105, %p106
      %p108 = scmp.ne.s32.totalorder %s100, %s102
      %p109 = scmp.eq.s32.totalorder %s25, 1
      %p110 = por %p108, %p109
      %p111 = scmp.ne.s32.totalorder %s102, %s103
      %p112 = scmp.eq.s32.totalorder %s25, 0
      %p113 = por %p111, %p112
      %p114 = scmp.ne.s32.totalorder %s102, %s103
      %p115 = scmp.eq.s32.totalorder %s26, 1
      %p116 = por %p114, %p115
      %p118 = scmp.ne.s32.totalorder %s103, %s117
      %p119 = scmp.eq.s32.totalorder %s26, 0
      %p120 = por %p118, %p119
      %s122 = sadd.s32 %s121, 1
      %p125 = scmp.eq.s32.totalorder %s20, 1
      %p126 = scmp.ne.s32.totalorder %s121, %s123
      %p127 = scmp.eq.s32.totalorder %s20, 0
      %p128 = por %p126, %p127
      %p129 = scmp.ne.s32.totalorder %s121, %s123
      %p130 = scmp.eq.s32.totalorder %s25, 1
      %p131 = por %p129, %p130
      %p132 = scmp.ne.s32.totalorder %s123, %s124
      %p133 = scmp.eq.s32.totalorder %s25, 0
      %p134 = por %p132, %p133
      %p135 = scmp.ne.s32.totalorder %s123, %s124
      %p136 = scmp.eq.s32.totalorder %s26, 1
      %p137 = por %p135, %p136
      %p139 = scmp.ne.s32.totalorder %s124, %s138
      %p140 = scmp.eq.s32.totalorder %s26, 0
      %p141 = por %p139, %p140
      %s142 = ssub.s32 %s27, %s39
      %s143 = ssub.s32 %s28, %s35
      %s144 = sor.u32 %s142, %s143
      %p145 = scmp.eq.s32.totalorder %s144, 0
      %s147 = sadd.s32 %s146, 1
      %s148 = scalar_select %p145, %s146, %s147
      %p151 = pneg %p145
      %p152 = scmp.eq.s32.totalorder %s20, 1
      %p153 = por %p151, %p152
      %p154 = scmp.ne.s32.totalorder %s146, %s149
      %p155 = scmp.eq.s32.totalorder %s20, 0
      %p156 = por %p154, %p155
      %p157 = scmp.ne.s32.totalorder %s146, %s149
      %p158 = scmp.eq.s32.totalorder %s25, 1
      %p159 = por %p157, %p158
      %p160 = scmp.ne.s32.totalorder %s149, %s150
      %p161 = scmp.eq.s32.totalorder %s25, 0
      %p162 = por %p160, %p161
      %p163 = scmp.ne.s32.totalorder %s149, %s150
      %p164 = scmp.eq.s32.totalorder %s26, 1
      %p165 = por %p163, %p164
      %p167 = scmp.ne.s32.totalorder %s150, %s166
      %p168 = scmp.eq.s32.totalorder %s26, 0
      %p169 = por %p167, %p168
      %p170 = scmp.le.s32.totalorder 1, %s20
      %p171 = scmp.lt.s32.totalorder %s20, 3
      %p172 = pnand %p170, %p171
      %p173 = pneg %p172
      // Predicated region
      $region9: #{tpu_custom_call.1} parent=5 // pred_check
        _
      $region10: #{tpu_custom_call.1} parent=5 // pred_check_branch
        %175 = sbr.rel (%p172) target = $region12
      $region11: #{tpu_custom_call.1} parent=5 // pred_region
        %s176 = ssub.s32 %s20, 1
        // Predicated region
        $region13: #{tpu_custom_call.1} parent=11 // pred_check
          %p177 = pneg %p113
        $region14: #{tpu_custom_call.1} parent=11 // pred_check_branch
          %179 = sbr.rel (%p177) target = $region16
        $region15: #{tpu_custom_call.1} parent=11 // pred_region
          %s181 = ssub.s32 4096, 4096
          %182 = vsyncadd [#allocation6], %s181
          %s183 = sshll.u32 [#allocation7], 4
          %s184 = int_to_ptr.vmem [resolvable:$true] %s183
          %189 = dma.hbm_to_vmem [thread:$0]  %s2, 4096, %s184, [#allocation6], 128, 128, 8
        $region16: #{tpu_custom_call.1} parent=11 // pred_fallthru
          _
        // Predicated region
        $region17: #{tpu_custom_call.1} parent=11 // pred_check
          %p190 = pneg %p134
        $region18: #{tpu_custom_call.1} parent=11 // pred_check_branch
          %192 = sbr.rel (%p190) target = $region20
        $region19: #{tpu_custom_call.1} parent=11 // pred_region
          %s194 = ssub.s32 2048, 2048
          %195 = vsyncadd [#allocation9], %s194
          %s196 = sshll.u32 [#allocation8], 4
          %s197 = int_to_ptr.vmem [resolvable:$true] %s196
          %202 = dma.hbm_to_vmem [thread:$0]  %s3, 2048, %s197, [#allocation9], 64, 64, 4
        $region20: #{tpu_custom_call.1} parent=11 // pred_fallthru
          _
      $region12: #{tpu_custom_call.1} parent=5 // pred_fallthru
        _
      %p203 = scmp.lt.s32.totalorder %s20, 2
      // Predicated region
      $region21: #{tpu_custom_call.1} parent=5 // pred_check
        %p204 = pneg %p203
      $region22: #{tpu_custom_call.1} parent=5 // pred_check_branch
        %206 = sbr.rel (%p204) target = $region24
      $region23: #{tpu_custom_call.1} parent=5 // pred_region
        // Predicated region
        $region25: #{tpu_custom_call.1} parent=23 // pred_check
          %p207 = pneg %p54
        $region26: #{tpu_custom_call.1} parent=23 // pred_check_branch
          %209 = sbr.rel (%p207) target = $region28
        $region27: #{tpu_custom_call.1} parent=23 // pred_region
          %s210 = sand.u32 %s44, 1
          %s211 = scalar_lea.sflag [#allocation3], %s210
          %s212 = sand.u32 %s44, 1
          %s213 = smul.addr %s212, 16
          %s214 = scalar_lea.vmem [#allocation2], %s213
          %s215 = smul.u32 2, %s28
          %s216 = ssub.s32 3, %s215
          %p217 = scmp.lt.s32.totalorder %s216, 2
          %s218 = scalar_select %p217, %s216, 2
          %s219 = smul.u32 128, %s218
          %s221 = ssub.s32 256, %s219
          %222 = vsyncadd %s211, %s221
          %p223 = scmp.ne.s32.totalorder 0, %s219
          %s224 = smul.addr %s27, 3
          %s225 = sadd.s32 %s215, %s224
          %s226 = smul.addr %s225, 128
          %s227 = scalar_lea.hbm %s0, %s226
          %s228 = smul.u32 8, %s218
          %s229 = sshll.u32 %s214, 4
          %s230 = int_to_ptr.vmem [resolvable:$true] %s229
          %s231 = sshll.u32 %s228, 4
          %235 = dma.hbm_to_vmem [thread:$0]  (%p223), %s227, %s231, %s230, %s211, 128, 128, 8
        $region28: #{tpu_custom_call.1} parent=23 // pred_fallthru
          _
        // Predicated region
        $region29: #{tpu_custom_call.1} parent=23 // pred_check
          %p236 = pneg %p86
        $region30: #{tpu_custom_call.1} parent=23 // pred_check_branch
          %238 = sbr.rel (%p236) target = $region32
        $region31: #{tpu_custom_call.1} parent=23 // pred_region
          %s239 = sand.u32 %s20, 1
          %s240 = scalar_lea.sflag [#allocation6], %s239
          %s241 = sand.u32 %s76, 1
          %s242 = smul.addr %s241, 8
          %s243 = scalar_lea.vmem [#allocation5], %s242
          %s244 = sadd.s32 %s28, 1
          %s245 = smul.u32 %s244, 2
          %s247 = ssub.s32 128, 128
          %248 = vsyncadd %s240, %s247
          %s249 = smul.addr %s27, 3
          %s250 = sadd.s32 %s245, %s249
          %s251 = smul.addr %s250, 128
          %s252 = scalar_lea.hbm %s1, %s251
          %s254 = sshll.u32 %s243, 4
          %s255 = int_to_ptr.vmem [resolvable:$true] %s254
          %257 = dma.hbm_to_vmem [thread:$0]  %s252, 128, %s255, %s240
        $region32: #{tpu_custom_call.1} parent=23 // pred_fallthru
          _
      $region24: #{tpu_custom_call.1} parent=5 // pred_fallthru
        _
      %p258 = scmp.le.s32.totalorder 1, %s20
      %p259 = scmp.lt.s32.totalorder %s20, 3
      %p260 = pnand %p258, %p259
      %p261 = pneg %p260
      // Predicated region
      $region33: #{tpu_custom_call.1} parent=5 // pred_check
        _
      $region34: #{tpu_custom_call.1} parent=5 // pred_check_branch
        %263 = sbr.rel (%p260) target = $region36
      $region35: #{tpu_custom_call.1} parent=5 // pred_region
        %s264 = ssub.s32 %s20, 1
        %s265 = sand.u32 %s47, 1
        %s266 = scalar_lea.sflag [#allocation3], %s265
        %s267 = sand.u32 %s47, 1
        %s268 = smul.addr %s267, 16
        %s269 = scalar_lea.vmem [#allocation2], %s268
        // Predicated region
        $region37: #{tpu_custom_call.1} parent=35 // pred_check
          %p270 = pneg %p60
        $region38: #{tpu_custom_call.1} parent=35 // pred_check_branch
          %272 = sbr.rel (%p270) target = $region40
        $region39: #{tpu_custom_call.1} parent=35 // pred_region
          %273 = dma.done %s266, 256
        $region40: #{tpu_custom_call.1} parent=35 // pred_fallthru
          _
        %s274 = sand.u32 %s25, 1
        %s275 = scalar_lea.sflag [#allocation6], %s274
        %s276 = sand.u32 %s79, 1
        %s277 = smul.addr %s276, 8
        %s278 = scalar_lea.vmem [#allocation5], %s277
        // Predicated region
        $region41: #{tpu_custom_call.1} parent=35 // pred_check
          %p279 = pneg %p92
        $region42: #{tpu_custom_call.1} parent=35 // pred_check_branch
          %281 = sbr.rel (%p279) target = $region44
        $region43: #{tpu_custom_call.1} parent=35 // pred_region
          %282 = dma.done %s275, 128
        $region44: #{tpu_custom_call.1} parent=35 // pred_fallthru
          _
        // Predicated region
        $region45: #{tpu_custom_call.1} parent=35 // pred_check
          %p283 = pneg %p113
        $region46: #{tpu_custom_call.1} parent=35 // pred_check_branch
          %285 = sbr.rel (%p283) target = $region48
        $region47: #{tpu_custom_call.1} parent=35 // pred_region
          %286 = dma.done [#allocation6], 4096
        $region48: #{tpu_custom_call.1} parent=35 // pred_fallthru
          _
        // Predicated region
        $region49: #{tpu_custom_call.1} parent=35 // pred_check
          %p287 = pneg %p134
        $region50: #{tpu_custom_call.1} parent=35 // pred_check_branch
          %289 = sbr.rel (%p287) target = $region52
        $region51: #{tpu_custom_call.1} parent=35 // pred_region
          %290 = dma.done [#allocation9], 2048
        $region52: #{tpu_custom_call.1} parent=35 // pred_fallthru
          _
        %s291 = sand.u32 %s47, 1
        %s292 = scalar_lea.sflag [#allocation3], %s291
        %s293 = sand.u32 %s47, 1
        %s294 = smul.addr %s293, 16
        %s295 = scalar_lea.vmem [#allocation2], %s294
        %p296 = pneg %p60
        %p297 = pneg %p57
        %s298 = sand.u32 %s25, 1
        %s299 = scalar_lea.sflag [#allocation6], %s298
        %s300 = sand.u32 %s79, 1
        %s301 = smul.addr %s300, 8
        %s302 = scalar_lea.vmem [#allocation5], %s301
        %p303 = pneg %p92
        %p304 = pneg %p89
        %p305 = pneg %p113
        %p306 = pneg %p110
        %p307 = pneg %p134
        %p308 = pneg %p131
        %p309 = pneg %p162
        %p310 = pneg %p159
        %s311 = sand.u32 %s149, 1
        %s312 = scalar_lea.sflag [#allocation4], %s311
        %s313 = sand.u32 %s149, 1
        %s314 = smul.addr %s313, 16
        %s315 = scalar_lea.vmem [#allocation10], %s314
        %s316 = smul.u32 2, %s30
        %s317 = ssub.s32 3, %s316
        %p318 = scmp.lt.s32.totalorder %s317, 2
        %s319 = scalar_select %p318, %s317, 2
        %s320 = smul.u32 128, %s319
        %s321 = sadd.s32 %s30, 1
        %s322 = smul.u32 %s321, 2
        %s323 = smul.u32 2, %s30
        %v325 = vld [vmem:[%s269] sm:$0xff]
        %v326 = vld [vmem:[%s269 + $0x8] sm:$0xff]
        %v327 = vld [vmem:[%s278] sm:$0xff]
        %vm331 = vcmask 1046528
        %v332 = vrot.slane %v325, 1
        %v333 = vrot.slane %v326, 1
        %v334 = vsel %vm331, %v332, %v333
        %v335 = vrot.slane %v327, 1
        %v336 = vsel %vm331, %v333, %v335
        %v339 = vpack.c.bf16 %v326, %v325
        %v340 = vpack.c.bf16 %v336, %v334
        %v341 = vld [vmem:[#allocation7] sm:$0xff]
        %v342 = vld [vmem:[#allocation7 + $0x8] sm:$0xff]
        %v343 = vld [vmem:[#allocation7 + $0x10] sm:$0xff]
        %v344 = vld [vmem:[#allocation7 + $0x18] sm:$0xff]
        %v345 = vld [vmem:[#allocation7 + $0x20] sm:$0xff]
        %v346 = vld [vmem:[#allocation7 + $0x28] sm:$0xff]
        %v347 = vld [vmem:[#allocation7 + $0x30] sm:$0xff]
        %v348 = vld [vmem:[#allocation7 + $0x38] sm:$0xff]
        %v349 = vld [vmem:[#allocation7 + $0x40] sm:$0xff]
        %v350 = vld [vmem:[#allocation7 + $0x48] sm:$0xff]
        %v351 = vld [vmem:[#allocation7 + $0x50] sm:$0xff]
        %v352 = vld [vmem:[#allocation7 + $0x58] sm:$0xff]
        %v353 = vld [vmem:[#allocation7 + $0x60] sm:$0xff]
        %v354 = vld [vmem:[#allocation7 + $0x68] sm:$0xff]
        %v355 = vld [vmem:[#allocation7 + $0x70] sm:$0xff]
        %v356 = vld [vmem:[#allocation7 + $0x78] sm:$0xff]
        %v357 = vld [vmem:[#allocation7 + $0x80] sm:$0xff]
        %v358 = vld [vmem:[#allocation7 + $0x88] sm:$0xff]
        %v359 = vld [vmem:[#allocation7 + $0x90] sm:$0xff]
        %v360 = vld [vmem:[#allocation7 + $0x98] sm:$0xff]
        %v361 = vld [vmem:[#allocation7 + $0xa0] sm:$0xff]
        %v362 = vld [vmem:[#allocation7 + $0xa8] sm:$0xff]
        %v363 = vld [vmem:[#allocation7 + $0xb0] sm:$0xff]
        %v364 = vld [vmem:[#allocation7 + $0xb8] sm:$0xff]
        %v365 = vld [vmem:[#allocation7 + $0xc0] sm:$0xff]
        %v366 = vld [vmem:[#allocation7 + $0xc8] sm:$0xff]
        %v367 = vld [vmem:[#allocation7 + $0xd0] sm:$0xff]
        %v368 = vld [vmem:[#allocation7 + $0xd8] sm:$0xff]
        %v369 = vld [vmem:[#allocation7 + $0xe0] sm:$0xff]
        %v370 = vld [vmem:[#allocation7 + $0xe8] sm:$0xff]
        %v371 = vld [vmem:[#allocation7 + $0xf0] sm:$0xff]
        %v372 = vld [vmem:[#allocation7 + $0xf8] sm:$0xff]
        %v405 = vunpack.c.l.b16 %v341
        %v406 = vunpack.c.h.b16 %v341
        %v407 = vunpack.c.l.b16 %v342
        %v408 = vunpack.c.h.b16 %v342
        %v409 = vunpack.c.l.b16 %v343
        %v410 = vunpack.c.h.b16 %v343
        %v411 = vunpack.c.l.b16 %v344
        %v412 = vunpack.c.h.b16 %v344
        %v413 = vunpack.c.l.b16 %v345
        %v414 = vunpack.c.h.b16 %v345
        %v415 = vunpack.c.l.b16 %v346
        %v416 = vunpack.c.h.b16 %v346
        %v417 = vunpack.c.l.b16 %v347
        %v418 = vunpack.c.h.b16 %v347
        %v419 = vunpack.c.l.b16 %v348
        %v420 = vunpack.c.h.b16 %v348
        %v421 = vunpack.c.l.b16 %v349
        %v422 = vunpack.c.h.b16 %v349
        %v423 = vunpack.c.l.b16 %v350
        %v424 = vunpack.c.h.b16 %v350
        %v425 = vunpack.c.l.b16 %v351
        %v426 = vunpack.c.h.b16 %v351
        %v427 = vunpack.c.l.b16 %v352
        %v428 = vunpack.c.h.b16 %v352
        %v429 = vunpack.c.l.b16 %v353
        %v430 = vunpack.c.h.b16 %v353
        %v431 = vunpack.c.l.b16 %v354
        %v432 = vunpack.c.h.b16 %v354
        %v433 = vunpack.c.l.b16 %v355
        %v434 = vunpack.c.h.b16 %v355
        %v435 = vunpack.c.l.b16 %v356
        %v436 = vunpack.c.h.b16 %v356
        %v437 = vunpack.c.l.b16 %v357
        %v438 = vunpack.c.h.b16 %v357
        %v439 = vunpack.c.l.b16 %v358
        %v440 = vunpack.c.h.b16 %v358
        %v441 = vunpack.c.l.b16 %v359
        %v442 = vunpack.c.h.b16 %v359
        %v443 = vunpack.c.l.b16 %v360
        %v444 = vunpack.c.h.b16 %v360
        %v445 = vunpack.c.l.b16 %v361
        %v446 = vunpack.c.h.b16 %v361
        %v447 = vunpack.c.l.b16 %v362
        %v448 = vunpack.c.h.b16 %v362
        %v449 = vunpack.c.l.b16 %v363
        %v450 = vunpack.c.h.b16 %v363
        %v451 = vunpack.c.l.b16 %v364
        %v452 = vunpack.c.h.b16 %v364
        %v453 = vunpack.c.l.b16 %v365
        %v454 = vunpack.c.h.b16 %v365
        %v455 = vunpack.c.l.b16 %v366
        %v456 = vunpack.c.h.b16 %v366
        %v457 = vunpack.c.l.b16 %v367
        %v458 = vunpack.c.h.b16 %v367
        %v459 = vunpack.c.l.b16 %v368
        %v460 = vunpack.c.h.b16 %v368
        %v461 = vunpack.c.l.b16 %v369
        %v462 = vunpack.c.h.b16 %v369
        %v463 = vunpack.c.l.b16 %v370
        %v464 = vunpack.c.h.b16 %v370
        %v465 = vunpack.c.l.b16 %v371
        %v466 = vunpack.c.h.b16 %v371
        %v467 = vunpack.c.l.b16 %v372
        %v468 = vunpack.c.h.b16 %v372
        %v469 = vpack.c.b16 %v407, %v405
        %v470 = vpack.c.b16 %v408, %v406
        %v471 = vpack.c.b16 %v411, %v409
        %v472 = vpack.c.b16 %v412, %v410
        %v473 = vpack.c.b16 %v415, %v413
        %v474 = vpack.c.b16 %v416, %v414
        %v475 = vpack.c.b16 %v419, %v417
        %v476 = vpack.c.b16 %v420, %v418
        %v477 = vpack.c.b16 %v423, %v421
        %v478 = vpack.c.b16 %v424, %v422
        %v479 = vpack.c.b16 %v427, %v425
        %v480 = vpack.c.b16 %v428, %v426
        %v481 = vpack.c.b16 %v431, %v429
        %v482 = vpack.c.b16 %v432, %v430
        %v483 = vpack.c.b16 %v435, %v433
        %v484 = vpack.c.b16 %v436, %v434
        %v485 = vpack.c.b16 %v439, %v437
        %v486 = vpack.c.b16 %v440, %v438
        %v487 = vpack.c.b16 %v443, %v441
        %v488 = vpack.c.b16 %v444, %v442
        %v489 = vpack.c.b16 %v447, %v445
        %v490 = vpack.c.b16 %v448, %v446
        %v491 = vpack.c.b16 %v451, %v449
        %v492 = vpack.c.b16 %v452, %v450
        %v493 = vpack.c.b16 %v455, %v453
        %v494 = vpack.c.b16 %v456, %v454
        %v495 = vpack.c.b16 %v459, %v457
        %v496 = vpack.c.b16 %v460, %v458
        %v497 = vpack.c.b16 %v463, %v461
        %v498 = vpack.c.b16 %v464, %v462
        %v499 = vpack.c.b16 %v467, %v465
        %v500 = vpack.c.b16 %v468, %v466
        %533 = vmatprep.subr.bf16.mxu0 %v470
        %534 = vmatpush1.bf16.msra.mxu0 %v469
        %535 = vmatprep.subr.bf16.mxu0 %v472
        %536 = vmatpush1.bf16.msra.mxu0 %v471
        %537 = vmatprep.subr.bf16.mxu0 %v474
        %538 = vmatpush1.bf16.msra.mxu0 %v473
        %539 = vmatprep.subr.bf16.mxu0 %v476
        %540 = vmatpush1.bf16.msra.mxu0 %v475
        %541 = vmatprep.subr.bf16.mxu0 %v478
        %542 = vmatpush1.bf16.msra.mxu0 %v477
        %543 = vmatprep.subr.bf16.mxu0 %v480
        %544 = vmatpush1.bf16.msra.mxu0 %v479
        %545 = vmatprep.subr.bf16.mxu0 %v482
        %546 = vmatpush1.bf16.msra.mxu0 %v481
        %547 = vmatprep.subr.bf16.mxu0 %v484
        %548 = vmatpush1.bf16.msra.mxu0 %v483
        %549 = vmatprep.subr.bf16.mxu0 %v486
        %550 = vmatpush1.bf16.msra.mxu0 %v485
        %551 = vmatprep.subr.bf16.mxu0 %v488
        %552 = vmatpush1.bf16.msra.mxu0 %v487
        %553 = vmatprep.subr.bf16.mxu0 %v490
        %554 = vmatpush1.bf16.msra.mxu0 %v489
        %555 = vmatprep.subr.bf16.mxu0 %v492
        %556 = vmatpush1.bf16.msra.mxu0 %v491
        %557 = vmatprep.subr.bf16.mxu0 %v494
        %558 = vmatpush1.bf16.msra.mxu0 %v493
        %559 = vmatprep.subr.bf16.mxu0 %v496
        %560 = vmatpush1.bf16.msra.mxu0 %v495
        %561 = vmatprep.subr.bf16.mxu0 %v498
        %562 = vmatpush1.bf16.msra.mxu0 %v497
        %563 = vmatprep.subr.bf16.mxu0 %v500
        %564 = vmatpush1.bf16.msra.mxu0 %v499
        %565 = vmatprep.mubr.bf16.mxu0 %v340
        %566 = vmatmul.mubr.bf16.gmra.mrb[0].mxu0 %v339
        %v567 = vpop.f32.mrb[0].mxu0
        %v568 = vadd.f32 0.0, %v567
        %v569 = vpop.f32.mrb[0].mxu0
        %v570 = vadd.f32 0.0, %v569
        %v571 = vpop.f32.mrb[0].mxu0
        %v572 = vadd.f32 0.0, %v571
        %v573 = vpop.f32.mrb[0].mxu0
        %v574 = vadd.f32 0.0, %v573
        %575 = vdwg.mxu0
        %v576 = vlaneseq
        %v577 = vand.u32 %v576, 127
        %vm578 = vcmp.eq.s32.totalorder %v577, 0
        %v579 = vsel %vm578, 0.0, %v570
        %v580 = vsel %vm578, 0.0, %v574
        %v581 = vmul.f32 %v568, %v568
        %v582 = vmul.f32 %v572, %v572
        %v583 = vmul.f32 %v579, %v579
        %v584 = vmul.f32 %v580, %v580
        %v585 = vadd.f32 %v581, %v583
        %v586 = vadd.f32 %v582, %v584
        %v587 = vrsqrt.pop %v585
        %v588 = vmul.f32 %v585, %v587
        %vm589 = vcmp.eq.f32.partialorder %v585, inf
        %v590 = vsel %vm589, %v585, %v588
        %vm591 = vcmp.eq.f32.partialorder %v585, 0.0
        %v592 = vand.u32 %v585, 2147483648
        %v593 = vsel %vm591, %v592, %v590
        %v594 = vrsqrt.pop %v586
        %v595 = vmul.f32 %v586, %v594
        %vm596 = vcmp.eq.f32.partialorder %v586, inf
        %v597 = vsel %vm596, %v586, %v595
        %vm598 = vcmp.eq.f32.partialorder %v586, 0.0
        %v599 = vand.u32 %v586, 2147483648
        %v600 = vsel %vm598, %v599, %v597
        %v601 = vand.u32 2147483647, %v570
        %v602 = vand.u32 2147483647, %v574
        %v603 = vsel %vm578, %v601, 0.0
        %v604 = vsel %vm578, %v602, 0.0
        %v605 = vpack.c.bf16 %v600, %v593
        %v606 = vpack.c.bf16 %v604, %v603
        %v607 = vld [vmem:[#allocation8] sm:$0xf]
        %v608 = vld [vmem:[#allocation8 + $0x4] sm:$0xf]
        %v609 = vld [vmem:[#allocation8 + $0x8] sm:$0xf]
        %v610 = vld [vmem:[#allocation8 + $0xc] sm:$0xf]
        %v611 = vld [vmem:[#allocation8 + $0x10] sm:$0xf]
        %v612 = vld [vmem:[#allocation8 + $0x14] sm:$0xf]
        %v613 = vld [vmem:[#allocation8 + $0x18] sm:$0xf]
        %v614 = vld [vmem:[#allocation8 + $0x1c] sm:$0xf]
        %v615 = vld [vmem:[#allocation8 + $0x20] sm:$0xf]
        %v616 = vld [vmem:[#allocation8 + $0x24] sm:$0xf]
        %v617 = vld [vmem:[#allocation8 + $0x28] sm:$0xf]
        %v618 = vld [vmem:[#allocation8 + $0x2c] sm:$0xf]
        %v619 = vld [vmem:[#allocation8 + $0x30] sm:$0xf]
        %v620 = vld [vmem:[#allocation8 + $0x34] sm:$0xf]
        %v621 = vld [vmem:[#allocation8 + $0x38] sm:$0xf]
        %v622 = vld [vmem:[#allocation8 + $0x3c] sm:$0xf]
        %v623 = vld [vmem:[#allocation8 + $0x40] sm:$0xf]
        %v624 = vld [vmem:[#allocation8 + $0x44] sm:$0xf]
        %v625 = vld [vmem:[#allocation8 + $0x48] sm:$0xf]
        %v626 = vld [vmem:[#allocation8 + $0x4c] sm:$0xf]
        %v627 = vld [vmem:[#allocation8 + $0x50] sm:$0xf]
        %v628 = vld [vmem:[#allocation8 + $0x54] sm:$0xf]
        %v629 = vld [vmem:[#allocation8 + $0x58] sm:$0xf]
        %v630 = vld [vmem:[#allocation8 + $0x5c] sm:$0xf]
        %v631 = vld [vmem:[#allocation8 + $0x60] sm:$0xf]
        %v632 = vld [vmem:[#allocation8 + $0x64] sm:$0xf]
        %v633 = vld [vmem:[#allocation8 + $0x68] sm:$0xf]
        %v634 = vld [vmem:[#allocation8 + $0x6c] sm:$0xf]
        %v635 = vld [vmem:[#allocation8 + $0x70] sm:$0xf]
        %v636 = vld [vmem:[#allocation8 + $0x74] sm:$0xf]
        %v637 = vld [vmem:[#allocation8 + $0x78] sm:$0xf]
        %v638 = vld [vmem:[#allocation8 + $0x7c] sm:$0xf]
        %v671 = vunpack.c.l.b16 %v607
        %v672 = vunpack.c.l.b16 %v608
        %v673 = vunpack.c.l.b16 %v609
        %v674 = vunpack.c.l.b16 %v610
        %v675 = vunpack.c.l.b16 %v611
        %v676 = vunpack.c.l.b16 %v612
        %v677 = vunpack.c.l.b16 %v613
        %v678 = vunpack.c.l.b16 %v614
        %v679 = vunpack.c.l.b16 %v615
        %v680 = vunpack.c.l.b16 %v616
        %v681 = vunpack.c.l.b16 %v617
        %v682 = vunpack.c.l.b16 %v618
        %v683 = vunpack.c.l.b16 %v619
        %v684 = vunpack.c.l.b16 %v620
        %v685 = vunpack.c.l.b16 %v621
        %v686 = vunpack.c.l.b16 %v622
        %v687 = vunpack.c.l.b16 %v623
        %v688 = vunpack.c.l.b16 %v624
        %v689 = vunpack.c.l.b16 %v625
        %v690 = vunpack.c.l.b16 %v626
        %v691 = vunpack.c.l.b16 %v627
        %v692 = vunpack.c.l.b16 %v628
        %v693 = vunpack.c.l.b16 %v629
        %v694 = vunpack.c.l.b16 %v630
        %v695 = vunpack.c.l.b16 %v631
        %v696 = vunpack.c.l.b16 %v632
        %v697 = vunpack.c.l.b16 %v633
        %v698 = vunpack.c.l.b16 %v634
        %v699 = vunpack.c.l.b16 %v635
        %v700 = vunpack.c.l.b16 %v636
        %v701 = vunpack.c.l.b16 %v637
        %v702 = vunpack.c.l.b16 %v638
        %v703 = vpack.c.b16 %v672, %v671
        %v704 = vpack.c.b16 %v674, %v673
        %v705 = vpack.c.b16 %v676, %v675
        %v706 = vpack.c.b16 %v678, %v677
        %v707 = vpack.c.b16 %v680, %v679
        %v708 = vpack.c.b16 %v682, %v681
        %v709 = vpack.c.b16 %v684, %v683
        %v710 = vpack.c.b16 %v686, %v685
        %v711 = vpack.c.b16 %v688, %v687
        %v712 = vpack.c.b16 %v690, %v689
        %v713 = vpack.c.b16 %v692, %v691
        %v714 = vpack.c.b16 %v694, %v693
        %v715 = vpack.c.b16 %v696, %v695
        %v716 = vpack.c.b16 %v698, %v697
        %v717 = vpack.c.b16 %v700, %v699
        %v718 = vpack.c.b16 %v702, %v701
        %735 = vmatprep.subr.bf16.mxu0 0
        %736 = vmatpush1.bf16.msra.mxu0 %v703
        %737 = vmatprep.subr.bf16.mxu0 0
        %738 = vmatpush1.bf16.msra.mxu0 %v704
        %739 = vmatprep.subr.bf16.mxu0 0
        %740 = vmatpush1.bf16.msra.mxu0 %v705
        %741 = vmatprep.subr.bf16.mxu0 0
        %742 = vmatpush1.bf16.msra.mxu0 %v706
        %743 = vmatprep.subr.bf16.mxu0 0
        %744 = vmatpush1.bf16.msra.mxu0 %v707
        %745 = vmatprep.subr.bf16.mxu0 0
        %746 = vmatpush1.bf16.msra.mxu0 %v708
        %747 = vmatprep.subr.bf16.mxu0 0
        %748 = vmatpush1.bf16.msra.mxu0 %v709
        %749 = vmatprep.subr.bf16.mxu0 0
        %750 = vmatpush1.bf16.msra.mxu0 %v710
        %751 = vmatprep.subr.bf16.mxu0 0
        %752 = vmatpush1.bf16.msra.mxu0 %v711
        %753 = vmatprep.subr.bf16.mxu0 0
        %754 = vmatpush1.bf16.msra.mxu0 %v712
        %755 = vmatprep.subr.bf16.mxu0 0
        %756 = vmatpush1.bf16.msra.mxu0 %v713
        %757 = vmatprep.subr.bf16.mxu0 0
        %758 = vmatpush1.bf16.msra.mxu0 %v714
        %759 = vmatprep.subr.bf16.mxu0 0
        %760 = vmatpush1.bf16.msra.mxu0 %v715
        %761 = vmatprep.subr.bf16.mxu0 0
        %762 = vmatpush1.bf16.msra.mxu0 %v716
        %763 = vmatprep.subr.bf16.mxu0 0
        %764 = vmatpush1.bf16.msra.mxu0 %v717
        %765 = vmatprep.subr.bf16.mxu0 0
        %766 = vmatpush1.bf16.msra.mxu0 %v718
        %767 = vmatprep.mubr.bf16.mxu0 %v606
        %768 = vmatmul.mubr.bf16.gmra.mrb[0].mxu0 %v605
        %v769 = vpop.f32.mrb[0].mxu0
        %v770 = vadd.f32 0.0, %v769
        %v771 = vpop.f32.mrb[0].mxu0
        %v772 = vpop.f32.mrb[0].mxu0
        %v773 = vadd.f32 0.0, %v772
        %v774 = vpop.f32.mrb[0].mxu0
        %775 = vdwg.mxu0
        %v776 = vmax.f32 %v770, 1e-05
        %v777 = vmax.f32 %v773, 1e-05
        %v778 = vlog2.pop %v776
        %v779 = vmul.f32 %v778, 0.6931472
        %v780 = vlog2.pop %v777
        %v781 = vmul.f32 %v780, 0.6931472
        %782 = vst [vmem:[%s315] sm:$0xff] %v779
        %783 = vst [vmem:[%s315 + $0x8] sm:$0xff] %v781
        %s784 = sand.u32 %s149, 1
        %s785 = scalar_lea.sflag [#allocation4], %s784
        %s786 = sand.u32 %s149, 1
        %s787 = smul.addr %s786, 16
        %s788 = scalar_lea.vmem [#allocation10], %s787
        // Predicated region
        $region53: #{tpu_custom_call.1} parent=35 // pred_check
          %p789 = pneg %p159
        $region54: #{tpu_custom_call.1} parent=35 // pred_check_branch
          %791 = sbr.rel (%p789) target = $region56
        $region55: #{tpu_custom_call.1} parent=35 // pred_region
          %s792 = smul.u32 2, %s30
          %s794 = ssub.s32 256, 256
          %795 = vsyncadd %s785, %s794
          %s796 = smul.addr %s29, 2
          %s797 = sadd.s32 %s792, %s796
          %s798 = smul.addr %s797, 128
          %s799 = scalar_lea.hbm %s4, %s798
          %s800 = sshll.u32 %s788, 4
          %s801 = int_to_ptr.vmem [resolvable:$true] %s800
          %806 = dma.vmem_to_hbm [thread:$0]  %s801, 256, %s799, %s785, 128, 128, 8
        $region56: #{tpu_custom_call.1} parent=35 // pred_fallthru
          _
      $region36: #{tpu_custom_call.1} parent=5 // pred_fallthru
        _
      %p807 = scmp.le.s32.totalorder 2, %s20
      // Predicated region
      $region57: #{tpu_custom_call.1} parent=5 // pred_check
        %p808 = pneg %p807
      $region58: #{tpu_custom_call.1} parent=5 // pred_check_branch
        %810 = sbr.rel (%p808) target = $region60
      $region59: #{tpu_custom_call.1} parent=5 // pred_region
        %s811 = ssub.s32 %s20, 2
        // Predicated region
        $region61: #{tpu_custom_call.1} parent=59 // pred_check
          %p812 = pneg %p165
        $region62: #{tpu_custom_call.1} parent=59 // pred_check_branch
          %814 = sbr.rel (%p812) target = $region64
        $region63: #{tpu_custom_call.1} parent=59 // pred_region
          %s815 = sand.u32 %s150, 1
          %s816 = scalar_lea.sflag [#allocation4], %s815
          %s817 = sand.u32 %s150, 1
          %s818 = smul.addr %s817, 16
          %s819 = scalar_lea.vmem [#allocation10], %s818
          %820 = dma.done %s816, 256
        $region64: #{tpu_custom_call.1} parent=59 // pred_fallthru
          _
      $region60: #{tpu_custom_call.1} parent=5 // pred_fallthru
        _
    $region6: #{tpu_custom_call.1} parent=1 // loop_footer
      %s24 = sadd.s32 1, %s20
    $region7: #{tpu_custom_call.1} parent=1 // loop_footer_branch
      %19 = sbr.rel target = $region3
    $region8: #{tpu_custom_call.1} parent=1 // loop_exit
      _
    %821 = vsyncpa [#allocation3], 1
    %s822 = scalar_lea.sflag [#allocation3], 1
    %823 = vsyncpa %s822, 1
    %824 = vsyncpa [#allocation6], 1
    %s825 = scalar_lea.sflag [#allocation6], 1
    %826 = vsyncpa %s825, 1
    %827 = vsyncpa [#allocation9], 1
    %828 = vsyncpa [#allocation4], 1
    %s829 = scalar_lea.sflag [#allocation4], 1
    %830 = vsyncpa %s829, 1

</llo_original>
